<compile_context>
chip_gen: v5e
topology: v5e:2x2
jax: 0.10.0
libtpu: 0.0.40
codegen_flags: <defaults>
</compile_context>

<pallas_src>
import math

import jax
import jax.numpy as jnp
from jax.experimental import pallas as pl
from jax.experimental.pallas import tpu as pltpu


def _gfe_kernel_packed(t_ref, s_ref, b_ref, ph_ref, o_ref):
    # t_ref:  (TN, P)   packed time values (P logical rows per physical row)
    # s_ref:  (P, W)    0/1 spread matrix, W = P * embed_dim = 128
    # b_ref:  (1, W)    2*pi*B tiled to the packed width
    # ph_ref: (1, W)    phase: 0 for the cos half, -pi/2 for the sin half
    # o_ref:  (TN, W)   lane-dense packed output
    spread = jnp.dot(t_ref[...], s_ref[...], preferred_element_type=jnp.float32)
    o_ref[...] = jnp.cos(spread * b_ref[...] + ph_ref[...]).astype(o_ref.dtype)


def _gfe_kernel(t_ref, b_ref, ph_ref, o_ref):
    # Unpacked fallback (embed_dim >= 128, or row count not divisible by the
    # pack factor): VPU broadcast outer product + single cos, single store.
    o_ref[...] = jnp.cos(t_ref[...] * b_ref[...] + ph_ref[...]).astype(o_ref.dtype)


def gaussian_fourier_embedding(t, B, *, out_dtype=jnp.float32,
                               min_pallas_rows=16384,
                               vmem_budget_bytes=16 << 20):
    """t: (..., 1) float array.  B: (embed_dim//2, 1) parameter.

    Returns (..., embed_dim) = concat([cos(2*pi*t@B.T), sin(2*pi*t@B.T)], -1).
    """
    half = B.shape[0]
    embed_dim = 2 * half

    lead_shape = t.shape[:-1]
    n = 1
    for d in lead_shape:
        n *= d

    # Phase-folded coefficients:  out = cos(t * b_cat + phase).
    w = (2.0 * math.pi) * B.reshape(half).astype(jnp.float32)            # (half,)
    b_cat = jnp.concatenate([w, w])                                      # (embed_dim,)
    phase = jnp.concatenate([jnp.zeros((half,), jnp.float32),
                             jnp.full((half,), -0.5 * math.pi, jnp.float32)])

    # --- small-N fast path: pallas_call fixed cost dominates below this size.
    if n == 0 or n < min_pallas_rows:
        out = jnp.cos(t.astype(jnp.float32) * b_cat + phase)
        return out.astype(out_dtype)

    t_flat = t.reshape(n, 1).astype(jnp.float32)

    # --- lane-dense packing factor (output block last dim becomes 128).
    if embed_dim < 128 and 128 % embed_dim == 0 and n % (128 // embed_dim) == 0:
        p = 128 // embed_dim
    else:
        p = 1
    width = p * embed_dim
    n_phys = n // p

    b_pack = jnp.tile(b_cat, p).reshape(1, width)
    ph_pack = jnp.tile(phase, p).reshape(1, width)

    # --- tile rows from a VMEM byte budget (double-buffered out + t blocks);
    #     keep >= 4 grid steps so the two v7x TensorCores both get work.
    out_row_bytes = width * 4
    t_row_bytes = 128 * 4                       # (TN, p) f32 is lane-padded to 128
    tn = vmem_budget_bytes // (2 * (out_row_bytes + t_row_bytes))
    tn = min(tn, pl.cdiv(n_phys, 4))
    tn = max(tn, 256)
    tn = min(tn, ((n_phys + 7) // 8) * 8)       # never bigger than the whole array
    tn = max(8, (tn // 8) * 8)                  # multiple of 8 sublanes

    grid = (pl.cdiv(n_phys, tn),)               # ragged last block is masked

    if p > 1:
        # 0/1 spread matrix: S[j, l] = 1 iff output lane l belongs to logical row j.
        s_mat = (jnp.arange(width)[None, :] // embed_dim
                 == jnp.arange(p)[:, None]).astype(jnp.float32)
        kernel = _gfe_kernel_packed
        operands = (t_flat.reshape(n_phys, p), s_mat, b_pack, ph_pack)
        in_specs = [
            pl.BlockSpec((tn, p), lambda i: (i, 0)),       # row tile of packed t
            pl.BlockSpec((p, width), lambda i: (0, 0)),    # resident spread matrix
            pl.BlockSpec((1, width), lambda i: (0, 0)),    # resident 2*pi*B (tiled)
            pl.BlockSpec((1, width), lambda i: (0, 0)),    # resident phase
        ]
    else:
        kernel = _gfe_kernel
        operands = (t_flat, b_pack, ph_pack)
        in_specs = [
            pl.BlockSpec((tn, 1), lambda i: (i, 0)),
            pl.BlockSpec((1, width), lambda i: (0, 0)),
            pl.BlockSpec((1, width), lambda i: (0, 0)),
        ]

    out_phys = pl.pallas_call(
        kernel,
        out_shape=jax.ShapeDtypeStruct((n_phys, width), out_dtype),
        grid_spec=pl.GridSpec(
            grid=grid,
            in_specs=in_specs,
            out_specs=pl.BlockSpec((tn, width), lambda i: (i, 0)),
        ),
        compiler_params=pltpu.CompilerParams(
            dimension_semantics=("parallel",),   # shard tiles across v7x's 2 TCs
            vmem_limit_bytes=32 << 20,           # > v5e's 16 MiB default, <= v7x budget
        ),
    )(*operands)

    # (n_phys, p*embed_dim) is exactly the row-major (n, embed_dim) buffer.
    return out_phys.reshape(*lead_shape, embed_dim)


def gaussian_fourier_embedding_ref(t, B):
    """Pure-JAX reference mirroring the PyTorch forward."""
    proj = 2.0 * math.pi * jnp.matmul(t, B.T)
    return jnp.concatenate([jnp.cos(proj), jnp.sin(proj)], axis=-1)


if __name__ == "__main__":
    embed_dim = 64
    scale = 30.0

    key = jax.random.PRNGKey(0)
    k_b, k_t = jax.random.split(key)

    # Deterministic parameter init (mirrors torch.randn(embed_dim//2, 1) * scale).
    B = jax.random.normal(k_b, (embed_dim // 2, 1), dtype=jnp.float32) * scale

    # f32 cos/sin at phase arguments of magnitude ~2*pi*scale*|z| (a few hundred)
    # are argument-rounding limited: one ulp of the argument is ~6e-5, so the
    # mathematically-equivalent re-orderings here (2*pi fold, sin(x)=cos(x-pi/2)
    # fold, Mosaic-vs-XLA range reduction) differ by up to a few 1e-4 in the output.
    TOL = dict(atol=5e-4, rtol=0.0)

    # 1) Small example shape (batch=2, seq=8, trailing feature dim 1):
    #    default call takes the fused-jnp fast path ...
    t_small = jax.random.uniform(k_t, (2, 8, 1), dtype=jnp.float32)
    out_small = jax.block_until_ready(gaussian_fourier_embedding(t_small, B))
    ref_small = gaussian_fourier_embedding_ref(t_small, B)
    assert out_small.shape == (2, 8, embed_dim), out_small.shape
    assert jnp.allclose(out_small, ref_small, **TOL), "fast path mismatch"

    #    ... and the same shape forced through the Pallas kernel (packed path).
    out_small_k = jax.block_until_ready(
        gaussian_fourier_embedding(t_small, B, min_pallas_rows=0))
    assert out_small_k.shape == (2, 8, embed_dim), out_small_k.shape
    assert jnp.allclose(out_small_k, ref_small, **TOL), "kernel (small) mismatch"

    # 2) Odd, non-tile-aligned row count -> unpacked kernel + ragged last block.
    t_odd = jax.random.uniform(jax.random.PRNGKey(1), (3, 1001, 1), dtype=jnp.float32)
    out_odd = jax.block_until_ready(
        gaussian_fourier_embedding(t_odd, B, min_pallas_rows=0))
    ref_odd = gaussian_fourier_embedding_ref(t_odd, B)
    assert out_odd.shape == (3, 1001, embed_dim), out_odd.shape
    assert jnp.allclose(out_odd, ref_odd, **TOL), "kernel (odd/ragged) mismatch"

    # 3) Larger input that naturally takes the Pallas path (packed, multi-step grid).
    t_big = jax.random.uniform(jax.random.PRNGKey(2), (4, 8192, 1), dtype=jnp.float32)
    out_big = jax.block_until_ready(gaussian_fourier_embedding(t_big, B))
    ref_big = gaussian_fourier_embedding_ref(t_big, B)
    assert out_big.shape == (4, 8192, embed_dim), out_big.shape
    assert jnp.allclose(out_big, ref_big, **TOL), "kernel (large) mismatch"

    print("KERNEL_OK")
</pallas_src>

<mosaic_0001>
module attributes {stable_mosaic.version = 11 : i64} {
  func.func @_gfe_kernel_packed(%arg0: i32, %arg1: memref<8x2xf32, #tpu.memory_space<vmem>>, %arg2: memref<2x128xf32, #tpu.memory_space<vmem>>, %arg3: memref<1x128xf32, #tpu.memory_space<vmem>>, %arg4: memref<1x128xf32, #tpu.memory_space<vmem>>, %arg5: memref<8x128xf32, #tpu.memory_space<vmem>>) attributes {dimension_semantics = [#tpu.dimension_semantics<parallel>], iteration_bounds = array<i64: 1>, scalar_prefetch = 0 : i64, scratch_operands = 0 : i64, tpu.core_type = #tpu.core_type<tc>, window_params = [{transform_indices = @transform_0, window_bounds = array<i64: 8, 2>}, {pipeline_mode = #tpu.pipeline_mode<synchronous>, transform_indices = @transform_1, window_bounds = array<i64: 2, 128>}, {pipeline_mode = #tpu.pipeline_mode<synchronous>, transform_indices = @transform_2, window_bounds = array<i64: 1, 128>}, {pipeline_mode = #tpu.pipeline_mode<synchronous>, transform_indices = @transform_3, window_bounds = array<i64: 1, 128>}, {transform_indices = @transform_4, window_bounds = array<i64: 8, 128>}]} {
    %c0 = arith.constant 0 : index
    %c0_0 = arith.constant 0 : index
    %0 = vector.load %arg1[%c0, %c0_0] : memref<8x2xf32, #tpu.memory_space<vmem>>, vector<8x2xf32>
    %c0_1 = arith.constant 0 : index
    %c0_2 = arith.constant 0 : index
    %1 = vector.load %arg2[%c0_1, %c0_2] : memref<2x128xf32, #tpu.memory_space<vmem>>, vector<2x128xf32>
    %cst = arith.constant dense<0.000000e+00> : vector<8x128xf32>
    %2 = tpu.matmul %0, %1, %cst {dimension_numbers = #tpu.dot_dimension_numbers<[1], [0], [0], [1], [0, 0, 1, 1], [], []>} : vector<8x2xf32>, vector<2x128xf32>, vector<8x128xf32> -> vector<8x128xf32>
    %c0_3 = arith.constant 0 : index
    %c0_4 = arith.constant 0 : index
    %3 = vector.load %arg3[%c0_3, %c0_4] : memref<1x128xf32, #tpu.memory_space<vmem>>, vector<1x128xf32>
    %4 = vector.broadcast %3 : vector<1x128xf32> to vector<8x128xf32>
    %5 = arith.mulf %2, %4 : vector<8x128xf32>
    %c0_5 = arith.constant 0 : index
    %c0_6 = arith.constant 0 : index
    %6 = vector.load %arg4[%c0_5, %c0_6] : memref<1x128xf32, #tpu.memory_space<vmem>>, vector<1x128xf32>
    %7 = vector.broadcast %6 : vector<1x128xf32> to vector<8x128xf32>
    %8 = arith.addf %5, %7 : vector<8x128xf32>
    %9 = math.cos %8 : vector<8x128xf32>
    %c0_7 = arith.constant 0 : index
    %c0_8 = arith.constant 0 : index
    %10 = vector.load %arg5[%c0_7, %c0_8] : memref<8x128xf32, #tpu.memory_space<vmem>>, vector<8x128xf32>
    tpu.vector_store %arg5[%c0_7, %c0_8], %9 {strides = array<i32>} : memref<8x128xf32, #tpu.memory_space<vmem>>, vector<8x128xf32>,
    return
  }
  func.func @transform_0(%arg0: i32) -> (i32, i32) {
    %c0_i32 = arith.constant 0 : i32
    %c0_i32_0 = arith.constant 0 : i32
    return %arg0, %c0_i32 : i32, i32
  }
  func.func @transform_1(%arg0: i32) -> (i32, i32) {
    %c0_i32 = arith.constant 0 : i32
    %c0_i32_0 = arith.constant 0 : i32
    %c0_i32_1 = arith.constant 0 : i32
    return %c0_i32, %c0_i32_0 : i32, i32
  }
  func.func @transform_2(%arg0: i32) -> (i32, i32) {
    %c0_i32 = arith.constant 0 : i32
    %c0_i32_0 = arith.constant 0 : i32
    %c0_i32_1 = arith.constant 0 : i32
    return %c0_i32, %c0_i32_0 : i32, i32
  }
  func.func @transform_3(%arg0: i32) -> (i32, i32) {
    %c0_i32 = arith.constant 0 : i32
    %c0_i32_0 = arith.constant 0 : i32
    %c0_i32_1 = arith.constant 0 : i32
    return %c0_i32, %c0_i32_0 : i32, i32
  }
  func.func @transform_4(%arg0: i32) -> (i32, i32) {
    %c0_i32 = arith.constant 0 : i32
    %c0_i32_0 = arith.constant 0 : i32
    return %arg0, %c0_i32 : i32, i32
  }
}

</mosaic_0001>

<llo_original>
// kernel: tpu_custom_call.1
$region0: #{tpu_custom_call.1}
  #allocation0 [shape = 'u32[]', space=smem, size = 0x4, offset = 0x4, fixed_abs, tag = 'smem constant byte address 0x4 - core index']
  #allocation1 [shape = 'u32[72,128]{1,0:T(1,128)}', space=vmem, size = 0x9000, scoped, tag = 'internal scratch']
  %s0 = inlined_call_operand.vmem [shape: f32[8,2], index: 0, kind: input, shape index: {}]
  %s1 = inlined_call_operand.vmem [shape: f32[2,128], index: 1, kind: input, shape index: {}]
  %s2 = inlined_call_operand.vmem [shape: f32[1,128], index: 2, kind: input, shape index: {}]
  %s3 = inlined_call_operand.vmem [shape: f32[1,128], index: 3, kind: input, shape index: {}]
  %s4 = inlined_call_operand.hbm [shape: f32[8,128], index: 4, kind: output, shape index: {}]
  %s5 = sld [smem:[#allocation0]]
  $region26: #{tpu_custom_call.1} parent=0
    _
  %s7 = ssub.s32 1, %s5
  %s8 = scalar_select 0, %s7, %s5
  $region1: #{tpu_custom_call.1} parent=0
    #allocation2 [shape = 'u8[4096]{0}', space=vmem, size = 0x1000, scoped, tag = 'output window, operand 0, single buffered']
    #allocation3 [shape = 's32[1]{0}', space=sflag, size = 0x4, scoped, tag = 'scoped memory for tpu_custom_call.1']
    %9 = vsyncpa [#allocation3], 0
    // Predicated region
    $region2: #{tpu_custom_call.1} parent=1 // pred_check
      _
    $region3: #{tpu_custom_call.1} parent=1 // pred_check_branch
      %11 = sbr.rel (0) target = $region5
    $region4: #{tpu_custom_call.1} parent=1 // pred_region
      _
    $region5: #{tpu_custom_call.1} parent=1 // pred_fallthru
      _
    // Predicated region
    $region6: #{tpu_custom_call.1} parent=1 // pred_check
      _
    $region7: #{tpu_custom_call.1} parent=1 // pred_check_branch
      %13 = sbr.rel (0) target = $region9
    $region8: #{tpu_custom_call.1} parent=1 // pred_region
      _
    $region9: #{tpu_custom_call.1} parent=1 // pred_fallthru
      _
    // Predicated region
    $region10: #{tpu_custom_call.1} parent=1 // pred_check
      _
    $region11: #{tpu_custom_call.1} parent=1 // pred_check_branch
      %15 = sbr.rel (0) target = $region13
    $region12: #{tpu_custom_call.1} parent=1 // pred_region
      _
    $region13: #{tpu_custom_call.1} parent=1 // pred_fallthru
      _
    // Predicated region
    $region14: #{tpu_custom_call.1} parent=1 // pred_check
      _
    $region15: #{tpu_custom_call.1} parent=1 // pred_check_branch
      %17 = sbr.rel (0) target = $region17
    $region16: #{tpu_custom_call.1} parent=1 // pred_region
      _
    $region17: #{tpu_custom_call.1} parent=1 // pred_fallthru
      _
    %v18 = vld [vmem:[%s0] sm:$0xff]
    %v19 = vld [vmem:[%s1] sm:$0x3]
    %vm20 = vcmask 15360
    %v22 = vsel %vm20, %v18, 0
    %vm24 = vcmask 1041408
    %v26 = vsel %vm24, %v19, 0
    %28 = vmatpush.msra.mxu0 0.0
    %29 = vmatpush.msra.mxu0 0.0
    %30 = vmatpush.msra.mxu0 0.0
    %31 = vmatpush.msra.mxu0 0.0
    %32 = vmatpush.msra.mxu0 0.0
    %33 = vmatpush.msra.mxu0 0.0
    %34 = vmatpush.msra.mxu0 0.0
    %35 = vmatpush.msra.mxu0 0.0
    %36 = vmatpush.msra.mxu0 0.0
    %37 = vmatpush.msra.mxu0 0.0
    %38 = vmatpush.msra.mxu0 0.0
    %39 = vmatpush.msra.mxu0 0.0
    %40 = vmatpush.msra.mxu0 0.0
    %41 = vmatpush.msra.mxu0 0.0
    %42 = vmatpush.msra.mxu0 0.0
    %43 = vmatpush.msra.mxu0 %v26
    %44 = vmatmul.f32.gmra.mxu0 %v22
    %v45 = vpop.f32.mrf.mxu0
    %v46 = vadd.f32 0.0, %v45
    %47 = vdwg.mxu0
    %v48 = vld [vmem:[%s2] sm:$0x1]
    %v50 = vperm.slane %v48, 0
    %v52 = vmul.f32 %v46, %v50
    %v53 = vld [vmem:[%s3] sm:$0x1]
    %v55 = vperm.slane %v53, 0
    %v57 = vadd.f32 %v52, %v55
    %v58 = vand.u32 2147483647, %v57
    %vm59 = vcmp.le.f32.partialorder %v58, 0.7853982
    %vm60 = vcmp.lt.s32.totalorder %v57, 0
    %v61 = vand.u32 %v57, 2139095040
    %v62 = vshrl.u32 %v61, 23
    %v63 = vsub.s32 %v62, 127
    %v64 = vand.u32 2147483647, %v57
    %v65 = vand.u32 %v64, 8388607
    %v66 = vor.u32 %v65, 8388608
    %v67 = vsub.s32 0, %v66
    %v68 = vadd.s32 %v63, 1
    %vm69 = vcmp.gt.s32.totalorder %v68, 0
    %v70 = vsel %vm69, %v68, 0
    %v71 = vshrl.u32 %v70, 5
    %v72 = vand.u32 %v70, 31
    %v73 = vsub.s32 32, %v72
    %v74 = vshrl.u32 683565275, %v73
    %v75 = vshll.u32 683565275, %v72
    %v76 = vshrl.u32 2475754826, %v73
    %v77 = vor.u32 %v75, %v76
    %v78 = vshll.u32 2475754826, %v72
    %v79 = vshrl.u32 2131351028, %v73
    %v80 = vor.u32 %v78, %v79
    %v81 = vshll.u32 2131351028, %v72
    %v82 = vshrl.u32 2102212464, %v73
    %v83 = vor.u32 %v81, %v82
    %v84 = vshll.u32 2102212464, %v72
    %v85 = vshrl.u32 920167782, %v73
    %v86 = vor.u32 %v84, %v85
    %v87 = vshll.u32 920167782, %v72
    %v88 = vshrl.u32 1326507024, %v73
    %v89 = vor.u32 %v87, %v88
    %vm90 = vcmp.lt.s32.totalorder %v71, 1
    %vm91 = vcmp.lt.s32.totalorder %v71, 2
    %vm92 = vcmp.lt.s32.totalorder %v71, 3
    %vm93 = vcmp.lt.s32.totalorder %v71, 4
    %v94 = vsel %vm90, %v74, %v77
    %v95 = vsel %vm93, %v83, 2102212464
    %v96 = vsel %vm92, %v80, %v95
    %v97 = vsel %vm91, %v94, %v96
    %v98 = vsel %vm90, %v77, %v80
    %v99 = vsel %vm93, %v86, 920167782
    %v100 = vsel %vm92, %v83, %v99
    %v101 = vsel %vm91, %v98, %v100
    %v102 = vsel %vm90, %v80, %v83
    %v103 = vsel %vm93, %v89, 1326507024
    %v104 = vsel %vm92, %v86, %v103
    %v105 = vsel %vm91, %v102, %v104
    %v106 = vshll.u32 %v66, 8
    %v107 = vand.u32 %v106, 65535
    %v108 = vshrl.u32 %v106, 16
    %v109 = vand.u32 %v105, 65535
    %v110 = vshrl.u32 %v105, 16
    %v111 = vmul.u32 %v107, %v109
    %v112 = vmul.u32 %v107, %v110
    %v113 = vmul.u32 %v108, %v109
    %v114 = vmul.u32 %v108, %v110
    %v115 = vshll.u32 %v112, 16
    %v116 = vshrl.u32 %v112, 16
    %v117 = vshll.u32 %v113, 16
    %v118 = vshrl.u32 %v113, 16
    %vm119 = vc.u32 %v111, %v115
    %v120 = vsel %vm119, 1, 0
    %v121 = vadd.s32 %v111, %v115
    %v122 = vadd.s32 %v114, %v120
    %vm123 = vc.u32 %v121, %v117
    %v124 = vsel %vm123, 1, 0
    %v125 = vadd.s32 %v121, %v117
    %v126 = vadd.s32 %v122, %v124
    %v127 = vadd.s32 %v126, %v116
    %v128 = vadd.s32 %v127, %v118
    %v129 = vand.u32 %v106, 65535
    %v130 = vshrl.u32 %v106, 16
    %v131 = vand.u32 %v101, 65535
    %v132 = vshrl.u32 %v101, 16
    %v133 = vmul.u32 %v129, %v131
    %v134 = vmul.u32 %v129, %v132
    %v135 = vmul.u32 %v130, %v131
    %v136 = vmul.u32 %v130, %v132
    %v137 = vshll.u32 %v134, 16
    %v138 = vshrl.u32 %v134, 16
    %v139 = vshll.u32 %v135, 16
    %v140 = vshrl.u32 %v135, 16
    %vm141 = vc.u32 %v133, %v137
    %v142 = vsel %vm141, 1, 0
    %v143 = vadd.s32 %v133, %v137
    %v144 = vadd.s32 %v136, %v142
    %vm145 = vc.u32 %v143, %v139
    %v146 = vsel %vm145, 1, 0
    %v147 = vadd.s32 %v143, %v139
    %v148 = vadd.s32 %v144, %v146
    %v149 = vadd.s32 %v148, %v138
    %v150 = vadd.s32 %v149, %v140
    %v151 = vmul.u32 %v106, %v97
    %v152 = vadd.s32 %v128, %v147
    %vm153 = vc.u32 %v128, %v147
    %v154 = vadd.s32 %v150, 1
    %v155 = vsel %vm153, %v154, %v150
    %v156 = vadd.s32 %v151, %v155
    %v157 = vadd.s32 %v156, 536870912
    %v158 = vshrl.u32 %v157, 30
    %v159 = vshll.u32 %v158, 30
    %v160 = vsub.s32 %v156, %v159
    %vm161 = vcmp.lt.s32.totalorder %v160, 0
    %v162 = vsub.s32 0, %v160
    %v163 = vsel %vm161, %v162, %v160
    %v164 = vclz %v163
    %v165 = vsub.s32 %v164, 2
    %vm166 = vcmp.gt.s32.totalorder 0, %v165
    %v167 = vsel %vm166, 0, %v165
    %v168 = vsub.s32 32, %v167
    %v169 = vshll.u32 %v160, %v167
    %v170 = vshrl.u32 %v152, %v168
    %v171 = vor.u32 %v169, %v170
    %v172 = vsub.s32 4294967266, %v167
    %v173 = vadd.s32 %v172, 127
    %v174 = vshll.u32 %v173, 23
    %v175 = vor.u32 4788187, %v174
    %v176 = vand.u32 2147483647, %v175
    %v178 = vcvt.s32.f32 %v171
    %v179 = vmul.f32 %v178, %v176
    %v180 = vxor.u32 %v179, 2147483648
    %v181 = vsel %vm60, %v180, %v179
    %v182 = vsub.s32 4, %v158
    %v183 = vsel %vm60, %v182, %v158
    %v184 = vsel %vm59, %v57, %v181
    %v185 = vsel %vm59, 0, %v183
    %v186 = vmul.f32 %v184, %v184
    %v187 = vmul.f32 %v186, -0.001358992
    %v188 = vadd.f32 %v187, 0.041655596
    %v189 = vmul.f32 %v186, %v188
    %v190 = vadd.f32 %v189, -0.4999988
    %v191 = vmul.f32 %v186, %v190
    %v192 = vadd.f32 1.0, %v191
    %v193 = vmul.f32 %v184, %v184
    %v194 = vmul.f32 %v193, -0.00019511016
    %v195 = vadd.f32 %v194, 0.008332121
    %v196 = vmul.f32 %v193, %v195
    %v197 = vadd.f32 %v196, -0.16666654
    %v198 = vmul.f32 %v193, %v197
    %v199 = vadd.f32 %v198, 1.0
    %v200 = vmul.f32 %v199, %v184
    %vm201 = vweird.f32 %v57
    %v202 = vand.u32 %v185, 3
    %vm203 = vcmp.lt.s32.totalorder %v202, 2
    %vm204 = vcmp.eq.s32.totalorder %v202, 0
    %v205 = vxor.u32 %v200, 2147483648
    %v206 = vsel %vm204, %v192, %v205
    %vm207 = vcmp.eq.s32.totalorder %v202, 2
    %v208 = vxor.u32 %v192, 2147483648
    %v209 = vsel %vm207, %v208, %v200
    %v210 = vsel %vm203, %v206, %v209
    %v211 = vsel %vm201, nan, %v210
    %212 = vst [vmem:[#allocation2] sm:$0xff] %v211
    // Predicated region
    $region18: #{tpu_custom_call.1} parent=1 // pred_check
      _
    $region19: #{tpu_custom_call.1} parent=1 // pred_check_branch
      %214 = sbr.rel (0) target = $region21
    $region20: #{tpu_custom_call.1} parent=1 // pred_region
      %216 = vsyncadd [#allocation3], 0
      %s218 = sshll.u32 [#allocation2], 4
      %s219 = int_to_ptr.vmem [resolvable:$true] %s218
      %s220 = sshll.u32 %s4, 4
      %s221 = int_to_ptr.hbm [resolvable:$true] %s220
      %223 = dma.vmem_to_hbm [thread:$0]  %s219, 128, %s221, [#allocation3]
    $region21: #{tpu_custom_call.1} parent=1 // pred_fallthru
      _
    // Predicated region
    $region22: #{tpu_custom_call.1} parent=1 // pred_check
      _
    $region23: #{tpu_custom_call.1} parent=1 // pred_check_branch
      %225 = sbr.rel (0) target = $region25
    $region24: #{tpu_custom_call.1} parent=1 // pred_region
      %227 = dma.done [#allocation3], 128
    $region25: #{tpu_custom_call.1} parent=1 // pred_fallthru
      _
    %228 = vsyncpa [#allocation3], 1

</llo_original>
